<compile_context>
chip_gen: v6e
topology: v6e:2x2x1
jax: 0.10.0
libtpu: 0.0.40
codegen_flags: <defaults>
</compile_context>

<pallas_src>
import functools

import jax
import jax.numpy as jnp
from jax.experimental import pallas as pl
from jax.experimental.pallas import tpu as pltpu

LANES = 128
SUBLANES = 8
MAX_TILE_ROWS = 2048  # (2048,128) f32 tile = 1 MiB


def _l1_reduce_kernel(rows, tile_rows, pred_ref, tgt_ref, abs_part_ref, sq_part_ref):
    """'mean'/'sum' path: per-tile (8,128) partial sums of |d| and d^2."""
    i = pl.program_id(0)
    d = pred_ref[...].astype(jnp.float32) - tgt_ref[...].astype(jnp.float32)
    ad = jnp.abs(d)
    sq = d * d
    if rows % tile_rows != 0:  # static: last grid tile is ragged -> mask OOB rows
        r = jax.lax.broadcasted_iota(jnp.int32, d.shape, 0) + i * tile_rows
        mask = r < rows
        ad = jnp.where(mask, ad, 0.0)
        sq = jnp.where(mask, sq, 0.0)
    # (tile_rows,128) -> (tile_rows//8, 8, 128) -> sum over leading axis:
    # vreg-wise VPU adds only; no per-step cross-lane reduction.
    abs_part_ref[...] = jnp.sum(ad.reshape(-1, SUBLANES, LANES), axis=0)
    sq_part_ref[...] = jnp.sum(sq.reshape(-1, SUBLANES, LANES), axis=0)


def _l1_none_kernel(rows, tile_rows, pred_ref, tgt_ref, absdiff_ref, sq_part_ref):
    """'none' path: elementwise |d| plus d^2 partials (PSNR only)."""
    i = pl.program_id(0)
    d = pred_ref[...].astype(jnp.float32) - tgt_ref[...].astype(jnp.float32)
    absdiff_ref[...] = jnp.abs(d).astype(absdiff_ref.dtype)
    sq = d * d
    if rows % tile_rows != 0:
        r = jax.lax.broadcasted_iota(jnp.int32, d.shape, 0) + i * tile_rows
        sq = jnp.where(r < rows, sq, 0.0)
    sq_part_ref[...] = jnp.sum(sq.reshape(-1, SUBLANES, LANES), axis=0)


def _run_reduce(pred2d, tgt2d, tile_rows):
    rows, _ = pred2d.shape
    num_tiles = pl.cdiv(rows, tile_rows)
    kern = functools.partial(_l1_reduce_kernel, rows, tile_rows)
    abs_p, sq_p = pl.pallas_call(
        kern,
        out_shape=(
            jax.ShapeDtypeStruct((num_tiles * SUBLANES, LANES), jnp.float32),
            jax.ShapeDtypeStruct((num_tiles * SUBLANES, LANES), jnp.float32),
        ),
        grid_spec=pltpu.PrefetchScalarGridSpec(
            num_scalar_prefetch=0,
            grid=(num_tiles,),
            in_specs=[
                pl.BlockSpec((tile_rows, LANES), lambda i: (i, 0)),
                pl.BlockSpec((tile_rows, LANES), lambda i: (i, 0)),
            ],
            out_specs=[
                pl.BlockSpec((SUBLANES, LANES), lambda i: (i, 0)),
                pl.BlockSpec((SUBLANES, LANES), lambda i: (i, 0)),
            ],
        ),
        compiler_params=pltpu.CompilerParams(
            dimension_semantics=("parallel",),  # disjoint output blocks -> megacore OK
        ),
    )(pred2d, tgt2d)
    return jnp.sum(abs_p), jnp.sum(sq_p)


def _run_none(pred2d, tgt2d, tile_rows, out_dtype):
    rows, _ = pred2d.shape
    num_tiles = pl.cdiv(rows, tile_rows)
    kern = functools.partial(_l1_none_kernel, rows, tile_rows)
    absdiff, sq_p = pl.pallas_call(
        kern,
        out_shape=(
            jax.ShapeDtypeStruct((rows, LANES), out_dtype),
            jax.ShapeDtypeStruct((num_tiles * SUBLANES, LANES), jnp.float32),
        ),
        grid_spec=pltpu.PrefetchScalarGridSpec(
            num_scalar_prefetch=0,
            grid=(num_tiles,),
            in_specs=[
                pl.BlockSpec((tile_rows, LANES), lambda i: (i, 0)),
                pl.BlockSpec((tile_rows, LANES), lambda i: (i, 0)),
            ],
            out_specs=[
                pl.BlockSpec((tile_rows, LANES), lambda i: (i, 0)),
                pl.BlockSpec((SUBLANES, LANES), lambda i: (i, 0)),
            ],
        ),
        compiler_params=pltpu.CompilerParams(
            dimension_semantics=("parallel",),
        ),
    )(pred2d, tgt2d)
    return absdiff, jnp.sum(sq_p)


class L1Loss:
    """JAX/Pallas port of mmseg L1Loss (forward pass only)."""

    def __init__(self, loss_weight=1.0, reduction='mean', loss_name='L1Loss'):
        self.loss_weight = loss_weight
        self.reduction = reduction
        self._loss_name = loss_name

    def __call__(self, pred, target, weight=None, **kwargs):
        # NOTE: `weight` is accepted but intentionally ignored, matching the
        # reference forward (it never passes weight down to F.l1_loss).
        assert pred.shape == target.shape
        orig_shape = pred.shape
        n_elem = int(pred.size)
        out_dtype = jnp.result_type(pred.dtype, target.dtype)

        # Keep native dtype (no wrapper upcast); cast to f32 per-tile in-kernel.
        pred_f = jnp.ravel(jnp.asarray(pred))
        tgt_f = jnp.ravel(jnp.asarray(target))

        # Pad only if needed so the flat length is a multiple of 8*128.
        # Zero-padded tail gives diff == 0, contributing nothing to the sums.
        chunk = SUBLANES * LANES
        pad = (-n_elem) % chunk
        if pad:
            pred_f = jnp.pad(pred_f, (0, pad))
            tgt_f = jnp.pad(tgt_f, (0, pad))
        rows = pred_f.size // LANES  # multiple of 8
        pred2d = pred_f.reshape(rows, LANES)
        tgt2d = tgt_f.reshape(rows, LANES)

        tile_rows = min(MAX_TILE_ROWS, rows)  # big lane-dense tiles, VMEM-safe

        if self.reduction in ('mean', 'sum'):
            abs_sum, sq_sum = _run_reduce(pred2d, tgt2d, tile_rows)
            mse = sq_sum / n_elem
            psnr = 10.0 * jnp.log10(1.0 / mse)
            jax.debug.print('psnr: {}', psnr)  # safe under jit as well
            loss = abs_sum / n_elem if self.reduction == 'mean' else abs_sum
        elif self.reduction == 'none':
            absdiff, sq_sum = _run_none(pred2d, tgt2d, tile_rows, out_dtype)
            mse = sq_sum / n_elem
            psnr = 10.0 * jnp.log10(1.0 / mse)
            jax.debug.print('psnr: {}', psnr)
            loss = absdiff.reshape(-1)[:n_elem].reshape(orig_shape)
        else:
            raise ValueError(f'unsupported reduction: {self.reduction}')
        return self.loss_weight * loss

    @property
    def loss_name(self):
        return self._loss_name


if __name__ == "__main__":
    key = jax.random.PRNGKey(0)
    k1, k2 = jax.random.split(key)
    # Small NCHW inputs consistent with the module docstring.
    N, C, H, W = 2, 4, 16, 16
    pred = jax.random.uniform(k1, (N, C, H, W), dtype=jnp.float32)
    target = jax.random.uniform(k2, (N, C, H, W), dtype=jnp.float32)

    # reduction='mean'
    loss_mean = L1Loss(loss_weight=1.0, reduction='mean')(pred, target)
    loss_mean = jax.block_until_ready(loss_mean)
    ref_mean = jnp.mean(jnp.abs(pred - target))
    assert jnp.allclose(loss_mean, ref_mean, rtol=1e-5, atol=1e-6), (loss_mean, ref_mean)

    # reduction='sum'
    loss_sum = L1Loss(loss_weight=1.0, reduction='sum')(pred, target)
    loss_sum = jax.block_until_ready(loss_sum)
    ref_sum = jnp.sum(jnp.abs(pred - target))
    assert jnp.allclose(loss_sum, ref_sum, rtol=1e-5, atol=1e-5), (loss_sum, ref_sum)

    # reduction='none'
    loss_none = L1Loss(loss_weight=1.0, reduction='none')(pred, target)
    loss_none = jax.block_until_ready(loss_none)
    ref_none = jnp.abs(pred - target)
    assert jnp.allclose(loss_none, ref_none, rtol=1e-5, atol=1e-6)

    # Extra check exercising multi-tile grid + ragged-last-tile masking + padding.
    k3, k4 = jax.random.split(k1)
    big_shape = (1, 3, 300, 300)  # 270000 elems -> 2112 rows -> 2 grid tiles
    pred_b = jax.random.uniform(k3, big_shape, dtype=jnp.float32)
    target_b = jax.random.uniform(k4, big_shape, dtype=jnp.float32)
    loss_b = L1Loss(loss_weight=1.0, reduction='mean')(pred_b, target_b)
    loss_b = jax.block_until_ready(loss_b)
    ref_b = jnp.mean(jnp.abs(pred_b - target_b))
    assert jnp.allclose(loss_b, ref_b, rtol=1e-5, atol=1e-6), (loss_b, ref_b)

    print("KERNEL_OK")
</pallas_src>

<mosaic_0001>
module attributes {stable_mosaic.version = 11 : i64} {
  func.func @_l1_reduce_kernel(%arg0: i32, %arg1: memref<16x128xf32, #tpu.memory_space<vmem>>, %arg2: memref<16x128xf32, #tpu.memory_space<vmem>>, %arg3: memref<8x128xf32, #tpu.memory_space<vmem>>, %arg4: memref<8x128xf32, #tpu.memory_space<vmem>>) attributes {dimension_semantics = [#tpu.dimension_semantics<parallel>], iteration_bounds = array<i64: 1>, scalar_prefetch = 0 : i64, scratch_operands = 0 : i64, tpu.core_type = #tpu.core_type<tc>, window_params = [{transform_indices = @transform_0, window_bounds = array<i64: 16, 128>}, {transform_indices = @transform_1, window_bounds = array<i64: 16, 128>}, {transform_indices = @transform_2, window_bounds = array<i64: 8, 128>}, {transform_indices = @transform_3, window_bounds = array<i64: 8, 128>}]} {
    %c0 = arith.constant 0 : index
    %c0_0 = arith.constant 0 : index
    %0 = vector.load %arg1[%c0, %c0_0] : memref<16x128xf32, #tpu.memory_space<vmem>>, vector<16x128xf32>
    %c0_1 = arith.constant 0 : index
    %c0_2 = arith.constant 0 : index
    %1 = vector.load %arg2[%c0_1, %c0_2] : memref<16x128xf32, #tpu.memory_space<vmem>>, vector<16x128xf32>
    %2 = arith.subf %0, %1 : vector<16x128xf32>
    %3 = math.absf %2 : vector<16x128xf32>
    %4 = arith.mulf %2, %2 : vector<16x128xf32>
    %5 = vector.shape_cast %3 : vector<16x128xf32> to vector<2x8x128xf32>
    %cst = arith.constant dense<0.000000e+00> : vector<8x128xf32>
    %6 = vector.multi_reduction <add>, %5, %cst [0] : vector<2x8x128xf32> to vector<8x128xf32>
    %c0_3 = arith.constant 0 : index
    %c0_4 = arith.constant 0 : index
    %7 = vector.load %arg3[%c0_3, %c0_4] : memref<8x128xf32, #tpu.memory_space<vmem>>, vector<8x128xf32>
    tpu.vector_store %arg3[%c0_3, %c0_4], %6 {strides = array<i32>} : memref<8x128xf32, #tpu.memory_space<vmem>>, vector<8x128xf32>,
    %8 = vector.shape_cast %4 : vector<16x128xf32> to vector<2x8x128xf32>
    %cst_5 = arith.constant dense<0.000000e+00> : vector<8x128xf32>
    %9 = vector.multi_reduction <add>, %8, %cst_5 [0] : vector<2x8x128xf32> to vector<8x128xf32>
    %c0_6 = arith.constant 0 : index
    %c0_7 = arith.constant 0 : index
    %10 = vector.load %arg4[%c0_6, %c0_7] : memref<8x128xf32, #tpu.memory_space<vmem>>, vector<8x128xf32>
    tpu.vector_store %arg4[%c0_6, %c0_7], %9 {strides = array<i32>} : memref<8x128xf32, #tpu.memory_space<vmem>>, vector<8x128xf32>,
    return
  }
  func.func @transform_0(%arg0: i32) -> (i32, i32) {
    %c0_i32 = arith.constant 0 : i32
    %c0_i32_0 = arith.constant 0 : i32
    return %arg0, %c0_i32 : i32, i32
  }
  func.func @transform_1(%arg0: i32) -> (i32, i32) {
    %c0_i32 = arith.constant 0 : i32
    %c0_i32_0 = arith.constant 0 : i32
    return %arg0, %c0_i32 : i32, i32
  }
  func.func @transform_2(%arg0: i32) -> (i32, i32) {
    %c0_i32 = arith.constant 0 : i32
    %c0_i32_0 = arith.constant 0 : i32
    return %arg0, %c0_i32 : i32, i32
  }
  func.func @transform_3(%arg0: i32) -> (i32, i32) {
    %c0_i32 = arith.constant 0 : i32
    %c0_i32_0 = arith.constant 0 : i32
    return %arg0, %c0_i32 : i32, i32
  }
}

</mosaic_0001>

<llo_original>
// kernel: tpu_custom_call.1
$region0: #{tpu_custom_call.1}
  #allocation0 [shape = 'u32[]', space=smem, size = 0x4, offset = 0x4, fixed_abs, tag = 'smem constant byte address 0x4 - core index']
  #allocation1 [shape = 'u32[144,128]{1,0:T(1,128)}', space=vmem, size = 0x12000, scoped, tag = 'internal scratch']
  %s0 = inlined_call_operand.hbm [shape: f32[16,128], index: 0, kind: input, shape index: {}]
  %s1 = inlined_call_operand.hbm [shape: f32[16,128], index: 1, kind: input, shape index: {}]
  %s2 = inlined_call_operand.hbm [shape: f32[8,128], index: 2, kind: output, shape index: {0}]
  %s3 = inlined_call_operand.hbm [shape: f32[8,128], index: 3, kind: output, shape index: {1}]
  %4 = xla_tuple %s2, %s3
  %s5 = sld [smem:[#allocation0]]
  $region34: #{tpu_custom_call.1} parent=0
    _
  %s7 = ssub.s32 1, %s5
  %s8 = scalar_select 0, %s7, %s5
  $region1: #{tpu_custom_call.1} parent=0
    #allocation2 [shape = 'u8[8192]{0}', space=vmem, size = 0x2000, scoped, tag = 'input window, operand 0, single buffered']
    #allocation3 [shape = 's32[1]{0}', space=sflag, size = 0x4, scoped, tag = 'scoped memory for tpu_custom_call.1']
    #allocation4 [shape = 's32[1]{0}', space=sflag, size = 0x4, scoped, tag = 'scoped memory for tpu_custom_call.1']
    #allocation5 [shape = 'u8[8192]{0}', space=vmem, size = 0x2000, scoped, tag = 'input window, operand 1, single buffered']
    #allocation6 [shape = 's32[1]{0}', space=sflag, size = 0x4, scoped, tag = 'scoped memory for tpu_custom_call.1']
    #allocation7 [shape = 'u8[4096]{0}', space=vmem, size = 0x1000, scoped, tag = 'output window, operand 0, single buffered']
    #allocation8 [shape = 'u8[4096]{0}', space=vmem, size = 0x1000, scoped, tag = 'output window, operand 1, single buffered']
    #allocation9 [shape = 's32[1]{0}', space=sflag, size = 0x4, scoped, tag = 'scoped memory for tpu_custom_call.1']
    %9 = vsyncpa [#allocation3], 0
    %10 = vsyncpa [#allocation6], 0
    %11 = vsyncpa [#allocation4], 0
    %12 = vsyncpa [#allocation9], 0
    // Predicated region
    $region2: #{tpu_custom_call.1} parent=1 // pred_check
      _
    $region3: #{tpu_custom_call.1} parent=1 // pred_check_branch
      %14 = sbr.rel (0) target = $region5
    $region4: #{tpu_custom_call.1} parent=1 // pred_region
      %s16 = ssub.s32 256, 256
      %17 = vsyncadd [#allocation3], %s16
      %s18 = sshll.u32 [#allocation2], 4
      %s19 = int_to_ptr.vmem [resolvable:$true] %s18
      %24 = dma.hbm_to_vmem [thread:$0]  %s0, 256, %s19, [#allocation3], 128, 128, 8
    $region5: #{tpu_custom_call.1} parent=1 // pred_fallthru
      _
    // Predicated region
    $region6: #{tpu_custom_call.1} parent=1 // pred_check
      _
    $region7: #{tpu_custom_call.1} parent=1 // pred_check_branch
      %26 = sbr.rel (0) target = $region9
    $region8: #{tpu_custom_call.1} parent=1 // pred_region
      %s28 = ssub.s32 256, 256
      %29 = vsyncadd [#allocation6], %s28
      %s30 = sshll.u32 [#allocation5], 4
      %s31 = int_to_ptr.vmem [resolvable:$true] %s30
      %36 = dma.hbm_to_vmem [thread:$0]  %s1, 256, %s31, [#allocation6], 128, 128, 8
    $region9: #{tpu_custom_call.1} parent=1 // pred_fallthru
      _
    // Predicated region
    $region10: #{tpu_custom_call.1} parent=1 // pred_check
      _
    $region11: #{tpu_custom_call.1} parent=1 // pred_check_branch
      %38 = sbr.rel (0) target = $region13
    $region12: #{tpu_custom_call.1} parent=1 // pred_region
      %39 = dma.done [#allocation3], 256
    $region13: #{tpu_custom_call.1} parent=1 // pred_fallthru
      _
    // Predicated region
    $region14: #{tpu_custom_call.1} parent=1 // pred_check
      _
    $region15: #{tpu_custom_call.1} parent=1 // pred_check_branch
      %41 = sbr.rel (0) target = $region17
    $region16: #{tpu_custom_call.1} parent=1 // pred_region
      %42 = dma.done [#allocation6], 256
    $region17: #{tpu_custom_call.1} parent=1 // pred_fallthru
      _
    %v43 = vld [vmem:[#allocation2] sm:$0xff]
    %v44 = vld [vmem:[#allocation2 + $0x8] sm:$0xff]
    %v45 = vld [vmem:[#allocation5] sm:$0xff]
    %v46 = vld [vmem:[#allocation5 + $0x8] sm:$0xff]
    %v47 = vsub.f32 %v43, %v45
    %v48 = vsub.f32 %v44, %v46
    %v49 = vand.u32 2147483647, %v47
    %v50 = vand.u32 2147483647, %v48
    %v51 = vmul.f32 %v47, %v47
    %v52 = vmul.f32 %v48, %v48
    %v53 = vadd.f32 %v49, %v50
    %54 = vst [vmem:[#allocation7] sm:$0xff] %v53
    %v55 = vadd.f32 %v51, %v52
    %56 = vst [vmem:[#allocation8] sm:$0xff] %v55
    // Predicated region
    $region18: #{tpu_custom_call.1} parent=1 // pred_check
      _
    $region19: #{tpu_custom_call.1} parent=1 // pred_check_branch
      %58 = sbr.rel (0) target = $region21
    $region20: #{tpu_custom_call.1} parent=1 // pred_region
      %s60 = ssub.s32 128, 128
      %61 = vsyncadd [#allocation4], %s60
      %s63 = sshll.u32 [#allocation7], 4
      %s64 = int_to_ptr.vmem [resolvable:$true] %s63
      %66 = dma.vmem_to_hbm [thread:$0]  %s64, 128, %s2, [#allocation4]
    $region21: #{tpu_custom_call.1} parent=1 // pred_fallthru
      _
    // Predicated region
    $region22: #{tpu_custom_call.1} parent=1 // pred_check
      _
    $region23: #{tpu_custom_call.1} parent=1 // pred_check_branch
      %68 = sbr.rel (0) target = $region25
    $region24: #{tpu_custom_call.1} parent=1 // pred_region
      %s70 = ssub.s32 128, 128
      %71 = vsyncadd [#allocation9], %s70
      %s73 = sshll.u32 [#allocation8], 4
      %s74 = int_to_ptr.vmem [resolvable:$true] %s73
      %76 = dma.vmem_to_hbm [thread:$0]  %s74, 128, %s3, [#allocation9]
    $region25: #{tpu_custom_call.1} parent=1 // pred_fallthru
      _
    // Predicated region
    $region26: #{tpu_custom_call.1} parent=1 // pred_check
      _
    $region27: #{tpu_custom_call.1} parent=1 // pred_check_branch
      %78 = sbr.rel (0) target = $region29
    $region28: #{tpu_custom_call.1} parent=1 // pred_region
      %79 = dma.done [#allocation4], 128
    $region29: #{tpu_custom_call.1} parent=1 // pred_fallthru
      _
    // Predicated region
    $region30: #{tpu_custom_call.1} parent=1 // pred_check
      _
    $region31: #{tpu_custom_call.1} parent=1 // pred_check_branch
      %81 = sbr.rel (0) target = $region33
    $region32: #{tpu_custom_call.1} parent=1 // pred_region
      %82 = dma.done [#allocation9], 128
    $region33: #{tpu_custom_call.1} parent=1 // pred_fallthru
      _
    %83 = vsyncpa [#allocation3], 1
    %84 = vsyncpa [#allocation6], 1
    %85 = vsyncpa [#allocation4], 1
    %86 = vsyncpa [#allocation9], 1

</llo_original>
